<compile_context>
chip_gen: v5e
topology: v5e:2x2
jax: 0.10.0
libtpu: 0.0.40
codegen_flags: <defaults>
</compile_context>

<pallas_src>
import math

import jax
import jax.numpy as jnp
from jax.experimental import pallas as pl
from jax.experimental.pallas import tpu as pltpu


# ----------------------------------------------------------------------------- kernel


def _affine_kernel(x_ref, c_ref, w1_ref, b1_ref, w2_ref, b2_ref, o_ref):
    """One batch tile: out = x * exp(log_scale) + bias, both branch MLPs fused."""
    d_o = o_ref.shape[-1]

    # Fused first layer (BN already folded into W1/b1): h = relu(c @ W1_cat + b1_cat)
    cw = c_ref[...].astype(w1_ref.dtype)                 # bf16 (default) MXU input
    h = jnp.dot(cw, w1_ref[...], preferred_element_type=jnp.float32) + b1_ref[...]
    h = jnp.maximum(h, 0.0)

    # Fused second layer with block-diagonal W2_cat: y = h @ W2_cat + b2_cat
    y = jnp.dot(h.astype(w2_ref.dtype), w2_ref[...],
                preferred_element_type=jnp.float32) + b2_ref[...]

    log_scale = y[:, :d_o]                               # scale-branch half
    bias = y[:, d_o:]                                    # bias-branch half
    o_ref[...] = (x_ref[...] * jnp.exp(log_scale) + bias).astype(o_ref.dtype)


# ------------------------------------------------------------------- parameter helpers


def make_affine_params(key, dim_c, dim_out):
    """Synthetic params mirroring Affine.__init__: two mlp(dim_c, dim_out, dim_out) branches.

    Each branch: (w1, b1, gamma, beta, running_mean, running_var, w2, b2).
    """
    def mlp_params(k):
        ks = jax.random.split(k, 8)
        bound1 = 1.0 / math.sqrt(dim_c)
        bound2 = 1.0 / math.sqrt(dim_out)
        w1 = jax.random.uniform(ks[0], (dim_c, dim_out), jnp.float32, -bound1, bound1)
        b1 = jax.random.uniform(ks[1], (dim_out,), jnp.float32, -bound1, bound1)
        gamma = jax.random.uniform(ks[2], (dim_out,), jnp.float32, 0.5, 1.5)
        beta = jax.random.uniform(ks[3], (dim_out,), jnp.float32, -0.1, 0.1)
        mean = jax.random.normal(ks[4], (dim_out,), jnp.float32) * 0.1
        var = jax.random.uniform(ks[5], (dim_out,), jnp.float32, 0.5, 1.5)
        w2 = jax.random.uniform(ks[6], (dim_out, dim_out), jnp.float32, -bound2, bound2)
        b2 = jax.random.uniform(ks[7], (dim_out,), jnp.float32, -bound2, bound2)
        return (w1, b1, gamma, beta, mean, var, w2, b2)

    ks, kb = jax.random.split(key)
    return mlp_params(ks), mlp_params(kb)


def _fold_batchnorm(raw_mlp, eps):
    """Fold eval-mode BatchNorm1d into the preceding Linear (exact)."""
    w1, b1, gamma, beta, mean, var, w2, b2 = raw_mlp
    inv = gamma / jnp.sqrt(var + eps)
    return w1 * inv[None, :], (b1 - mean) * inv + beta, w2, b2


def _fuse_branches(raw_scale, raw_bias, *, eps, weight_dtype):
    """Fold BN into W1/b1 per branch, then fuse the two branches into one wide MLP."""
    w1s, b1s, w2s, b2s = _fold_batchnorm(raw_scale, eps)
    w1b, b1b, w2b, b2b = _fold_batchnorm(raw_bias, eps)

    z = jnp.zeros_like(w2s)
    w1 = jnp.concatenate([w1s, w1b], axis=1)                           # (d_c, 2*d_o)
    b1 = jnp.concatenate([b1s, b1b]).reshape(1, -1)                    # (1, 2*d_o)
    w2 = jnp.concatenate([jnp.concatenate([w2s, z], axis=1),
                          jnp.concatenate([z, w2b], axis=1)], axis=0)  # (2*d_o, 2*d_o)
    b2 = jnp.concatenate([b2s, b2b]).reshape(1, -1)                    # (1, 2*d_o)

    # Weights feed the MXU -> cast to weight_dtype (bf16 default).
    # Biases are added to the f32 accumulator on the VPU -> keep them f32.
    return w1.astype(weight_dtype), b1, w2.astype(weight_dtype), b2


# ----------------------------------------------------------------------------- wrapper


def _pick_block_b(B, cap=512):
    """>= 2 grid steps when B >= 16 (v7x megacore), rows a multiple of 8 (f32 sublanes),
    capped so x/out tiles double-buffer cheaply and their DMA overlaps the MLP compute."""
    if B < 16 or B % 8 != 0:
        return B
    target = max(8, min(cap, (B // 2) // 8 * 8))
    for bb in range(target, 7, -8):
        if B % bb == 0:
            return bb
    return B


def affine_forward(x, c, raw_params, *, block_b=None, weight_dtype=jnp.bfloat16, eps=1e-5):
    """x: [B, dim_out], c: [B, dim_c] -> [B, dim_out] (eval-mode forward of `Affine`)."""
    B, dim_out = x.shape
    Bc, dim_c = c.shape
    assert B == Bc

    if block_b is None:
        block_b = _pick_block_b(B)
    assert B % block_b == 0 and (block_b == B or block_b % 8 == 0), \
        "batch tile must be the full batch or a multiple of 8 (f32 sublane)"
    grid_b = B // block_b

    w1, b1, w2, b2 = _fuse_branches(raw_params[0], raw_params[1],
                                    eps=eps, weight_dtype=weight_dtype)
    weights = (w1, b1, w2, b2)

    # Rough VMEM budget: double-buffered x/c/out tiles + (worst case) double-buffered weights.
    tile_bytes = 2 * (block_b * dim_out * x.dtype.itemsize        # x
                      + block_b * dim_c * c.dtype.itemsize        # c
                      + block_b * dim_out * x.dtype.itemsize)     # out
    weight_bytes = sum(int(w.size) * w.dtype.itemsize for w in weights)
    need = tile_bytes + 2 * weight_bytes + (1 << 20)
    cp = dict(dimension_semantics=("parallel",))                  # v7x: shard batch over 2 TCs
    if need > (16 << 20):                                         # above v5e's scoped default
        cp["vmem_limit_bytes"] = int(min(2 * need, 100 << 20))

    def run(single_buffer_weights):
        def weight_spec(a):
            imap = lambda i, _nd=a.ndim: (0,) * _nd               # grid-invariant -> VMEM resident
            if single_buffer_weights:
                return pl.BlockSpec(a.shape, imap, pipeline_mode=pl.Buffered(1))
            return pl.BlockSpec(a.shape, imap)

        return pl.pallas_call(
            _affine_kernel,
            out_shape=jax.ShapeDtypeStruct((B, dim_out), x.dtype),
            grid=(grid_b,),
            in_specs=[
                pl.BlockSpec((block_b, dim_out), lambda i: (i, 0)),   # x
                pl.BlockSpec((block_b, dim_c), lambda i: (i, 0)),     # c
            ] + [weight_spec(w) for w in weights],
            out_specs=pl.BlockSpec((block_b, dim_out), lambda i: (i, 0)),
            compiler_params=pltpu.CompilerParams(**cp),
        )(x, c, *weights)

    try:
        # Weights never change across grid steps -> single-buffer them to halve their VMEM.
        return run(single_buffer_weights=True)
    except Exception:
        # pipeline_mode=pl.Buffered(1) not supported on this jax build: default buffering.
        return run(single_buffer_weights=False)


# --------------------------------------------------------------------------- reference


def affine_reference(x, c, raw_params, eps=1e-5):
    """Pure-JAX reference matching the PyTorch eval-mode forward."""
    def mlp_ref(cc, p):
        w1, b1, gamma, beta, mean, var, w2, b2 = p
        z = jnp.dot(cc, w1, precision=jax.lax.Precision.HIGHEST) + b1
        z = gamma * (z - mean) / jnp.sqrt(var + eps) + beta
        z = jnp.maximum(z, 0.0)
        return jnp.dot(z, w2, precision=jax.lax.Precision.HIGHEST) + b2

    raw_scale, raw_bias = raw_params
    return x * jnp.exp(mlp_ref(c, raw_scale)) + mlp_ref(c, raw_bias)


# -------------------------------------------------------------------------------- main


if __name__ == "__main__":
    key = jax.random.PRNGKey(0)
    kx, kc, kp = jax.random.split(key, 3)

    B, dim_c, dim_out = 16, 16, 32          # B=16 -> two batch tiles of 8 (exercises the grid)
    x = jax.random.normal(kx, (B, dim_out), dtype=jnp.float32)
    c = jax.random.normal(kc, (B, dim_c), dtype=jnp.float32)
    raw_params = make_affine_params(kp, dim_c=dim_c, dim_out=dim_out)

    ref = affine_reference(x, c, raw_params)

    # f32 MXU-input path: tight match to the eval-mode reference.
    out_f32 = jax.block_until_ready(
        affine_forward(x, c, raw_params, weight_dtype=jnp.float32))
    assert out_f32.shape == (B, dim_out), out_f32.shape
    assert jnp.allclose(out_f32, ref, atol=2e-4, rtol=2e-4), (out_f32, ref)

    # Default bf16 MXU-input path (f32 accumulation): looser tolerance.
    out_bf16 = jax.block_until_ready(affine_forward(x, c, raw_params))
    assert out_bf16.shape == (B, dim_out), out_bf16.shape
    assert jnp.allclose(out_bf16, ref, atol=1e-1, rtol=1e-1), (out_bf16, ref)

    print("KERNEL_OK")
</pallas_src>

<mosaic_0001>
module attributes {stable_mosaic.version = 11 : i64} {
  func.func @_affine_kernel(%arg0: i32, %arg1: memref<8x32xf32, #tpu.memory_space<vmem>>, %arg2: memref<8x16xf32, #tpu.memory_space<vmem>>, %arg3: memref<16x64xf32, #tpu.memory_space<vmem>>, %arg4: memref<1x64xf32, #tpu.memory_space<vmem>>, %arg5: memref<64x64xf32, #tpu.memory_space<vmem>>, %arg6: memref<1x64xf32, #tpu.memory_space<vmem>>, %arg7: memref<8x32xf32, #tpu.memory_space<vmem>>) attributes {dimension_semantics = [#tpu.dimension_semantics<parallel>], iteration_bounds = array<i64: 2>, scalar_prefetch = 0 : i64, scratch_operands = 0 : i64, tpu.core_type = #tpu.core_type<tc>, window_params = [{transform_indices = @transform_0, window_bounds = array<i64: 8, 32>}, {transform_indices = @transform_1, window_bounds = array<i64: 8, 16>}, {pipeline_mode = #tpu.pipeline_mode<synchronous>, transform_indices = @transform_2, window_bounds = array<i64: 16, 64>}, {pipeline_mode = #tpu.pipeline_mode<synchronous>, transform_indices = @transform_3, window_bounds = array<i64: 1, 64>}, {pipeline_mode = #tpu.pipeline_mode<synchronous>, transform_indices = @transform_4, window_bounds = array<i64: 64, 64>}, {pipeline_mode = #tpu.pipeline_mode<synchronous>, transform_indices = @transform_5, window_bounds = array<i64: 1, 64>}, {transform_indices = @transform_6, window_bounds = array<i64: 8, 32>}]} {
    %c0 = arith.constant 0 : index
    %c0_0 = arith.constant 0 : index
    %0 = vector.load %arg2[%c0, %c0_0] : memref<8x16xf32, #tpu.memory_space<vmem>>, vector<8x16xf32>
    %c0_1 = arith.constant 0 : index
    %c0_2 = arith.constant 0 : index
    %1 = vector.load %arg3[%c0_1, %c0_2] : memref<16x64xf32, #tpu.memory_space<vmem>>, vector<16x64xf32>
    %cst = arith.constant dense<0.000000e+00> : vector<8x64xf32>
    %2 = tpu.matmul %0, %1, %cst {dimension_numbers = #tpu.dot_dimension_numbers<[1], [0], [0], [1], [0, 0, 1, 1], [], []>} : vector<8x16xf32>, vector<16x64xf32>, vector<8x64xf32> -> vector<8x64xf32>
    %c0_3 = arith.constant 0 : index
    %c0_4 = arith.constant 0 : index
    %3 = vector.load %arg4[%c0_3, %c0_4] : memref<1x64xf32, #tpu.memory_space<vmem>>, vector<1x64xf32>
    %4 = vector.broadcast %3 : vector<1x64xf32> to vector<8x64xf32>
    %5 = arith.addf %2, %4 : vector<8x64xf32>
    %cst_5 = arith.constant 0.000000e+00 : f32
    %6 = vector.broadcast %cst_5 : f32 to vector<8x64xf32>
    %7 = arith.maximumf %5, %6 : vector<8x64xf32>
    %c0_6 = arith.constant 0 : index
    %c0_7 = arith.constant 0 : index
    %8 = vector.load %arg5[%c0_6, %c0_7] : memref<64x64xf32, #tpu.memory_space<vmem>>, vector<64x64xf32>
    %cst_8 = arith.constant dense<0.000000e+00> : vector<8x64xf32>
    %9 = tpu.matmul %7, %8, %cst_8 {dimension_numbers = #tpu.dot_dimension_numbers<[1], [0], [0], [1], [0, 0, 1, 1], [], []>} : vector<8x64xf32>, vector<64x64xf32>, vector<8x64xf32> -> vector<8x64xf32>
    %c0_9 = arith.constant 0 : index
    %c0_10 = arith.constant 0 : index
    %10 = vector.load %arg6[%c0_9, %c0_10] : memref<1x64xf32, #tpu.memory_space<vmem>>, vector<1x64xf32>
    %11 = vector.broadcast %10 : vector<1x64xf32> to vector<8x64xf32>
    %12 = arith.addf %9, %11 : vector<8x64xf32>
    %13 = vector.extract_strided_slice %12 {offsets = [0, 0], sizes = [8, 32], strides = [1, 1]} : vector<8x64xf32> to vector<8x32xf32>
    %14 = vector.extract_strided_slice %12 {offsets = [0, 32], sizes = [8, 32], strides = [1, 1]} : vector<8x64xf32> to vector<8x32xf32>
    %c0_11 = arith.constant 0 : index
    %c0_12 = arith.constant 0 : index
    %15 = vector.load %arg1[%c0_11, %c0_12] : memref<8x32xf32, #tpu.memory_space<vmem>>, vector<8x32xf32>
    %16 = math.exp %13 : vector<8x32xf32>
    %17 = arith.mulf %15, %16 : vector<8x32xf32>
    %18 = arith.addf %17, %14 : vector<8x32xf32>
    %c0_13 = arith.constant 0 : index
    %c0_14 = arith.constant 0 : index
    %19 = vector.load %arg7[%c0_13, %c0_14] : memref<8x32xf32, #tpu.memory_space<vmem>>, vector<8x32xf32>
    tpu.vector_store %arg7[%c0_13, %c0_14], %18 {strides = array<i32>} : memref<8x32xf32, #tpu.memory_space<vmem>>, vector<8x32xf32>,
    return
  }
  func.func @transform_0(%arg0: i32) -> (i32, i32) {
    %c0_i32 = arith.constant 0 : i32
    %c0_i32_0 = arith.constant 0 : i32
    return %arg0, %c0_i32 : i32, i32
  }
  func.func @transform_1(%arg0: i32) -> (i32, i32) {
    %c0_i32 = arith.constant 0 : i32
    %c0_i32_0 = arith.constant 0 : i32
    return %arg0, %c0_i32 : i32, i32
  }
  func.func @transform_2(%arg0: i32) -> (i32, i32) {
    %c0_i32 = arith.constant 0 : i32
    %c0_i32_0 = arith.constant 0 : i32
    %c0_i32_1 = arith.constant 0 : i32
    return %c0_i32, %c0_i32_0 : i32, i32
  }
  func.func @transform_3(%arg0: i32) -> (i32, i32) {
    %c0_i32 = arith.constant 0 : i32
    %c0_i32_0 = arith.constant 0 : i32
    %c0_i32_1 = arith.constant 0 : i32
    return %c0_i32, %c0_i32_0 : i32, i32
  }
  func.func @transform_4(%arg0: i32) -> (i32, i32) {
    %c0_i32 = arith.constant 0 : i32
    %c0_i32_0 = arith.constant 0 : i32
    %c0_i32_1 = arith.constant 0 : i32
    return %c0_i32, %c0_i32_0 : i32, i32
  }
  func.func @transform_5(%arg0: i32) -> (i32, i32) {
    %c0_i32 = arith.constant 0 : i32
    %c0_i32_0 = arith.constant 0 : i32
    %c0_i32_1 = arith.constant 0 : i32
    return %c0_i32, %c0_i32_0 : i32, i32
  }
  func.func @transform_6(%arg0: i32) -> (i32, i32) {
    %c0_i32 = arith.constant 0 : i32
    %c0_i32_0 = arith.constant 0 : i32
    return %arg0, %c0_i32 : i32, i32
  }
}

module attributes {stable_mosaic.version = 11 : i64} {
  func.func @_affine_kernel(%arg0: i32, %arg1: memref<8x32xf32, #tpu.memory_space<vmem>>, %arg2: memref<8x16xf32, #tpu.memory_space<vmem>>, %arg3: memref<16x64xf32, #tpu.memory_space<vmem>>, %arg4: memref<1x64xf32, #tpu.memory_space<vmem>>, %arg5: memref<64x64xf32, #tpu.memory_space<vmem>>, %arg6: memref<1x64xf32, #tpu.memory_space<vmem>>, %arg7: memref<8x32xf32, #tpu.memory_space<vmem>>) attributes {dimension_semantics = [#tpu.dimension_semantics<parallel>], iteration_bounds = array<i64: 2>, scalar_prefetch = 0 : i64, scratch_operands = 0 : i64, tpu.core_type = #tpu.core_type<tc>, window_params = [{transform_indices = @transform_0, window_bounds = array<i64: 8, 32>}, {transform_indices = @transform_1, window_bounds = array<i64: 8, 16>}, {pipeline_mode = #tpu.pipeline_mode<synchronous>, transform_indices = @transform_2, window_bounds = array<i64: 16, 64>}, {pipeline_mode = #tpu.pipeline_mode<synchronous>, transform_indices = @transform_3, window_bounds = array<i64: 1, 64>}, {pipeline_mode = #tpu.pipeline_mode<synchronous>, transform_indices = @transform_4, window_bounds = array<i64: 64, 64>}, {pipeline_mode = #tpu.pipeline_mode<synchronous>, transform_indices = @transform_5, window_bounds = array<i64: 1, 64>}, {transform_indices = @transform_6, window_bounds = array<i64: 8, 32>}]} {
    %c0 = arith.constant 0 : index
    %c0_0 = arith.constant 0 : index
    %0 = vector.load %arg2[%c0, %c0_0] : memref<8x16xf32, #tpu.memory_space<vmem>>, vector<8x16xf32>
    %c0_1 = arith.constant 0 : index
    %c0_2 = arith.constant 0 : index
    %1 = vector.load %arg3[%c0_1, %c0_2] : memref<16x64xf32, #tpu.memory_space<vmem>>, vector<16x64xf32>
    %cst = arith.constant dense<0.000000e+00> : vector<8x64xf32>
    %2 = tpu.matmul %0, %1, %cst {dimension_numbers = #tpu.dot_dimension_numbers<[1], [0], [0], [1], [0, 0, 1, 1], [], []>} : vector<8x16xf32>, vector<16x64xf32>, vector<8x64xf32> -> vector<8x64xf32>
    %c0_3 = arith.constant 0 : index
    %c0_4 = arith.constant 0 : index
    %3 = vector.load %arg4[%c0_3, %c0_4] : memref<1x64xf32, #tpu.memory_space<vmem>>, vector<1x64xf32>
    %4 = vector.broadcast %3 : vector<1x64xf32> to vector<8x64xf32>
    %5 = arith.addf %2, %4 : vector<8x64xf32>
    %cst_5 = arith.constant 0.000000e+00 : f32
    %6 = vector.broadcast %cst_5 : f32 to vector<8x64xf32>
    %7 = arith.maximumf %5, %6 : vector<8x64xf32>
    %c0_6 = arith.constant 0 : index
    %c0_7 = arith.constant 0 : index
    %8 = vector.load %arg5[%c0_6, %c0_7] : memref<64x64xf32, #tpu.memory_space<vmem>>, vector<64x64xf32>
    %cst_8 = arith.constant dense<0.000000e+00> : vector<8x64xf32>
    %9 = tpu.matmul %7, %8, %cst_8 {dimension_numbers = #tpu.dot_dimension_numbers<[1], [0], [0], [1], [0, 0, 1, 1], [], []>} : vector<8x64xf32>, vector<64x64xf32>, vector<8x64xf32> -> vector<8x64xf32>
    %c0_9 = arith.constant 0 : index
    %c0_10 = arith.constant 0 : index
    %10 = vector.load %arg6[%c0_9, %c0_10] : memref<1x64xf32, #tpu.memory_space<vmem>>, vector<1x64xf32>
    %11 = vector.broadcast %10 : vector<1x64xf32> to vector<8x64xf32>
    %12 = arith.addf %9, %11 : vector<8x64xf32>
    %13 = vector.extract_strided_slice %12 {offsets = [0, 0], sizes = [8, 32], strides = [1, 1]} : vector<8x64xf32> to vector<8x32xf32>
    %14 = vector.extract_strided_slice %12 {offsets = [0, 32], sizes = [8, 32], strides = [1, 1]} : vector<8x64xf32> to vector<8x32xf32>
    %c0_11 = arith.constant 0 : index
    %c0_12 = arith.constant 0 : index
    %15 = vector.load %arg1[%c0_11, %c0_12] : memref<8x32xf32, #tpu.memory_space<vmem>>, vector<8x32xf32>
    %16 = math.exp %13 : vector<8x32xf32>
    %17 = arith.mulf %15, %16 : vector<8x32xf32>
    %18 = arith.addf %17, %14 : vector<8x32xf32>
    %c0_13 = arith.constant 0 : index
    %c0_14 = arith.constant 0 : index
    %19 = vector.load %arg7[%c0_13, %c0_14] : memref<8x32xf32, #tpu.memory_space<vmem>>, vector<8x32xf32>
    tpu.vector_store %arg7[%c0_13, %c0_14], %18 {strides = array<i32>} : memref<8x32xf32, #tpu.memory_space<vmem>>, vector<8x32xf32>,
    return
  }
  func.func @transform_0(%arg0: i32) -> (i32, i32) {
    %c0_i32 = arith.constant 0 : i32
    %c0_i32_0 = arith.constant 0 : i32
    return %arg0, %c0_i32 : i32, i32
  }
  func.func @transform_1(%arg0: i32) -> (i32, i32) {
    %c0_i32 = arith.constant 0 : i32
    %c0_i32_0 = arith.constant 0 : i32
    return %arg0, %c0_i32 : i32, i32
  }
  func.func @transform_2(%arg0: i32) -> (i32, i32) {
    %c0_i32 = arith.constant 0 : i32
    %c0_i32_0 = arith.constant 0 : i32
    %c0_i32_1 = arith.constant 0 : i32
    return %c0_i32, %c0_i32_0 : i32, i32
  }
  func.func @transform_3(%arg0: i32) -> (i32, i32) {
    %c0_i32 = arith.constant 0 : i32
    %c0_i32_0 = arith.constant 0 : i32
    %c0_i32_1 = arith.constant 0 : i32
    return %c0_i32, %c0_i32_0 : i32, i32
  }
  func.func @transform_4(%arg0: i32) -> (i32, i32) {
    %c0_i32 = arith.constant 0 : i32
    %c0_i32_0 = arith.constant 0 : i32
    %c0_i32_1 = arith.constant 0 : i32
    return %c0_i32, %c0_i32_0 : i32, i32
  }
  func.func @transform_5(%arg0: i32) -> (i32, i32) {
    %c0_i32 = arith.constant 0 : i32
    %c0_i32_0 = arith.constant 0 : i32
    %c0_i32_1 = arith.constant 0 : i32
    return %c0_i32, %c0_i32_0 : i32, i32
  }
  func.func @transform_6(%arg0: i32) -> (i32, i32) {
    %c0_i32 = arith.constant 0 : i32
    %c0_i32_0 = arith.constant 0 : i32
    return %arg0, %c0_i32 : i32, i32
  }
}

</mosaic_0001>

<llo_original>
// kernel: tpu_custom_call.1
$region0: #{tpu_custom_call.1}
  #allocation0 [shape = 'u32[]', space=smem, size = 0x4, offset = 0x4, fixed_abs, tag = 'smem constant byte address 0x4 - core index']
  #allocation1 [shape = 'u32[72,128]{1,0:T(1,128)}', space=vmem, size = 0x9000, scoped, tag = 'internal scratch']
  %s0 = inlined_call_operand.hbm [shape: f32[16,32], index: 0, kind: input, shape index: {}]
  %s1 = inlined_call_operand.hbm [shape: f32[16,16], index: 1, kind: input, shape index: {}]
  %s2 = inlined_call_operand.hbm [shape: f32[16,64], index: 2, kind: input, shape index: {}]
  %s3 = inlined_call_operand.vmem [shape: f32[1,64], index: 3, kind: input, shape index: {}]
  %s4 = inlined_call_operand.hbm [shape: f32[64,64], index: 4, kind: input, shape index: {}]
  %s5 = inlined_call_operand.vmem [shape: f32[1,64], index: 5, kind: input, shape index: {}]
  %s6 = inlined_call_operand.hbm [shape: f32[16,32], index: 6, kind: output, shape index: {}]
  %s7 = sld [smem:[#allocation0]]
  $region73: #{tpu_custom_call.1} parent=0
    _
  %s9 = ssub.s32 1, %s7
  %s10 = scalar_select 0, %s9, %s7
  $region1: #{tpu_custom_call.1} parent=0
    #allocation2 [shape = 'u8[8192]{0}', space=vmem, size = 0x2000, scoped, tag = 'input window, operand 0']
    #allocation3 [shape = 's32[2]{0}', space=sflag, size = 0x8, scoped, tag = 'scoped memory for tpu_custom_call.1']
    #allocation4 [shape = 's32[2]{0}', space=sflag, size = 0x8, scoped, tag = 'scoped memory for tpu_custom_call.1']
    #allocation5 [shape = 'u8[8192]{0}', space=vmem, size = 0x2000, scoped, tag = 'input window, operand 1']
    #allocation6 [shape = 's32[2]{0}', space=sflag, size = 0x8, scoped, tag = 'scoped memory for tpu_custom_call.1']
    #allocation7 [shape = 'u8[8192]{0}', space=vmem, size = 0x2000, scoped, tag = 'input window, operand 2, single buffered']
    #allocation8 [shape = 'u8[32768]{0}', space=vmem, size = 0x8000, scoped, tag = 'input window, operand 4, single buffered']
    #allocation9 [shape = 's32[1]{0}', space=sflag, size = 0x4, scoped, tag = 'scoped memory for tpu_custom_call.1']
    #allocation10 [shape = 'u8[8192]{0}', space=vmem, size = 0x2000, scoped, tag = 'output window, operand 0']
    %11 = vsyncpa [#allocation3], 0
    %s12 = scalar_lea.sflag [#allocation3], 1
    %13 = vsyncpa %s12, 0
    %14 = vsyncpa [#allocation6], 0
    %s15 = scalar_lea.sflag [#allocation6], 1
    %16 = vsyncpa %s15, 0
    %17 = vsyncpa [#allocation9], 0
    %18 = vsyncpa [#allocation4], 0
    %s19 = scalar_lea.sflag [#allocation4], 1
    %20 = vsyncpa %s19, 0
    loop: start=0, step=1, limit=4
    $region2: #{tpu_custom_call.1} parent=1 // loop_pre_header
      _
    $region3: #{tpu_custom_call.1} parent=1 // loop_header
      %s22 = sphi 0, %s26
      %p23 = scmp.ge.s32.totalorder %s22, 4
      %s32 = sphi 0, %s34
      %s35 = sphi 0, %s32
      %s36 = sphi 0, %s35
      %s52 = sphi 0, %s36
      %s58 = sphi 0, %s60
      %s61 = sphi 0, %s58
      %s62 = sphi 0, %s61
      %s78 = sphi 0, %s62
      %s82 = sphi 0, %s82
      %s84 = sphi 0, %s82
      %s85 = sphi 0, %s84
      %s99 = sphi 0, %s85
      %s103 = sphi 0, %s103
      %s105 = sphi 0, %s103
      %s106 = sphi 0, %s105
      %s120 = sphi 0, %s106
      %s124 = sphi 0, %s124
      %s126 = sphi 0, %s124
      %s127 = sphi 0, %s126
      %s141 = sphi 0, %s127
      %s145 = sphi 0, %s145
      %s147 = sphi 0, %s145
      %s148 = sphi 0, %s147
      %s162 = sphi 0, %s148
      %s168 = sphi 0, %s170
      %s171 = sphi 0, %s168
      %s172 = sphi 0, %s171
      %s188 = sphi 0, %s172
    $region4: #{tpu_custom_call.1} parent=1 // loop_header_branch
      %25 = sbr.rel (%p23) target = $region8
    $region5: #{tpu_custom_call.1} parent=1 // loop_body
      %s27 = ssub.s32 %s22, 1
      %s28 = ssub.s32 %s22, 2
      %s29 = sadd.s32 %s22, 1
      %s30 = ssub.s32 %s22, %s29
      %p31 = scmp.eq.s32.totalorder %s30, 0
      %s33 = sadd.s32 %s32, 1
      %s34 = scalar_select %p31, %s32, %s33
      %p37 = pneg %p31
      %p38 = scmp.eq.s32.totalorder %s22, 1
      %p39 = por %p37, %p38
      %p40 = scmp.ne.s32.totalorder %s32, %s35
      %p41 = scmp.eq.s32.totalorder %s22, 0
      %p42 = por %p40, %p41
      %p43 = scmp.ne.s32.totalorder %s32, %s35
      %p44 = scmp.eq.s32.totalorder %s27, 1
      %p45 = por %p43, %p44
      %p46 = scmp.ne.s32.totalorder %s35, %s36
      %p47 = scmp.eq.s32.totalorder %s27, 0
      %p48 = por %p46, %p47
      %p49 = scmp.ne.s32.totalorder %s35, %s36
      %p50 = scmp.eq.s32.totalorder %s28, 1
      %p51 = por %p49, %p50
      %p53 = scmp.ne.s32.totalorder %s36, %s52
      %p54 = scmp.eq.s32.totalorder %s28, 0
      %p55 = por %p53, %p54
      %s56 = ssub.s32 %s22, %s29
      %p57 = scmp.eq.s32.totalorder %s56, 0
      %s59 = sadd.s32 %s58, 1
      %s60 = scalar_select %p57, %s58, %s59
      %p63 = pneg %p57
      %p64 = scmp.eq.s32.totalorder %s22, 1
      %p65 = por %p63, %p64
      %p66 = scmp.ne.s32.totalorder %s58, %s61
      %p67 = scmp.eq.s32.totalorder %s22, 0
      %p68 = por %p66, %p67
      %p69 = scmp.ne.s32.totalorder %s58, %s61
      %p70 = scmp.eq.s32.totalorder %s27, 1
      %p71 = por %p69, %p70
      %p72 = scmp.ne.s32.totalorder %s61, %s62
      %p73 = scmp.eq.s32.totalorder %s27, 0
      %p74 = por %p72, %p73
      %p75 = scmp.ne.s32.totalorder %s61, %s62
      %p76 = scmp.eq.s32.totalorder %s28, 1
      %p77 = por %p75, %p76
      %p79 = scmp.ne.s32.totalorder %s62, %s78
      %p80 = scmp.eq.s32.totalorder %s28, 0
      %p81 = por %p79, %p80
      %s83 = sadd.s32 %s82, 1
      %p86 = scmp.eq.s32.totalorder %s22, 1
      %p87 = scmp.ne.s32.totalorder %s82, %s84
      %p88 = scmp.eq.s32.totalorder %s22, 0
      %p89 = por %p87, %p88
      %p90 = scmp.ne.s32.totalorder %s82, %s84
      %p91 = scmp.eq.s32.totalorder %s27, 1
      %p92 = por %p90, %p91
      %p93 = scmp.ne.s32.totalorder %s84, %s85
      %p94 = scmp.eq.s32.totalorder %s27, 0
      %p95 = por %p93, %p94
      %p96 = scmp.ne.s32.totalorder %s84, %s85
      %p97 = scmp.eq.s32.totalorder %s28, 1
      %p98 = por %p96, %p97
      %p100 = scmp.ne.s32.totalorder %s85, %s99
      %p101 = scmp.eq.s32.totalorder %s28, 0
      %p102 = por %p100, %p101
      %s104 = sadd.s32 %s103, 1
      %p107 = scmp.eq.s32.totalorder %s22, 1
      %p108 = scmp.ne.s32.totalorder %s103, %s105
      %p109 = scmp.eq.s32.totalorder %s22, 0
      %p110 = por %p108, %p109
      %p111 = scmp.ne.s32.totalorder %s103, %s105
      %p112 = scmp.eq.s32.totalorder %s27, 1
      %p113 = por %p111, %p112
      %p114 = scmp.ne.s32.totalorder %s105, %s106
      %p115 = scmp.eq.s32.totalorder %s27, 0
      %p116 = por %p114, %p115
      %p117 = scmp.ne.s32.totalorder %s105, %s106
      %p118 = scmp.eq.s32.totalorder %s28, 1
      %p119 = por %p117, %p118
      %p121 = scmp.ne.s32.totalorder %s106, %s120
      %p122 = scmp.eq.s32.totalorder %s28, 0
      %p123 = por %p121, %p122
      %s125 = sadd.s32 %s124, 1
      %p128 = scmp.eq.s32.totalorder %s22, 1
      %p129 = scmp.ne.s32.totalorder %s124, %s126
      %p130 = scmp.eq.s32.totalorder %s22, 0
      %p131 = por %p129, %p130
      %p132 = scmp.ne.s32.totalorder %s124, %s126
      %p133 = scmp.eq.s32.totalorder %s27, 1
      %p134 = por %p132, %p133
      %p135 = scmp.ne.s32.totalorder %s126, %s127
      %p136 = scmp.eq.s32.totalorder %s27, 0
      %p137 = por %p135, %p136
      %p138 = scmp.ne.s32.totalorder %s126, %s127
      %p139 = scmp.eq.s32.totalorder %s28, 1
      %p140 = por %p138, %p139
      %p142 = scmp.ne.s32.totalorder %s127, %s141
      %p143 = scmp.eq.s32.totalorder %s28, 0
      %p144 = por %p142, %p143
      %s146 = sadd.s32 %s145, 1
      %p149 = scmp.eq.s32.totalorder %s22, 1
      %p150 = scmp.ne.s32.totalorder %s145, %s147
      %p151 = scmp.eq.s32.totalorder %s22, 0
      %p152 = por %p150, %p151
      %p153 = scmp.ne.s32.totalorder %s145, %s147
      %p154 = scmp.eq.s32.totalorder %s27, 1
      %p155 = por %p153, %p154
      %p156 = scmp.ne.s32.totalorder %s147, %s148
      %p157 = scmp.eq.s32.totalorder %s27, 0
      %p158 = por %p156, %p157
      %p159 = scmp.ne.s32.totalorder %s147, %s148
      %p160 = scmp.eq.s32.totalorder %s28, 1
      %p161 = por %p159, %p160
      %p163 = scmp.ne.s32.totalorder %s148, %s162
      %p164 = scmp.eq.s32.totalorder %s28, 0
      %p165 = por %p163, %p164
      %s166 = ssub.s32 %s22, %s29
      %p167 = scmp.eq.s32.totalorder %s166, 0
      %s169 = sadd.s32 %s168, 1
      %s170 = scalar_select %p167, %s168, %s169
      %p173 = pneg %p167
      %p174 = scmp.eq.s32.totalorder %s22, 1
      %p175 = por %p173, %p174
      %p176 = scmp.ne.s32.totalorder %s168, %s171
      %p177 = scmp.eq.s32.totalorder %s22, 0
      %p178 = por %p176, %p177
      %p179 = scmp.ne.s32.totalorder %s168, %s171
      %p180 = scmp.eq.s32.totalorder %s27, 1
      %p181 = por %p179, %p180
      %p182 = scmp.ne.s32.totalorder %s171, %s172
      %p183 = scmp.eq.s32.totalorder %s27, 0
      %p184 = por %p182, %p183
      %p185 = scmp.ne.s32.totalorder %s171, %s172
      %p186 = scmp.eq.s32.totalorder %s28, 1
      %p187 = por %p185, %p186
      %p189 = scmp.ne.s32.totalorder %s172, %s188
      %p190 = scmp.eq.s32.totalorder %s28, 0
      %p191 = por %p189, %p190
      %p192 = scmp.le.s32.totalorder 1, %s22
      %p193 = scmp.lt.s32.totalorder %s22, 3
      %p194 = pnand %p192, %p193
      %p195 = pneg %p194
      // Predicated region
      $region9: #{tpu_custom_call.1} parent=5 // pred_check
        _
      $region10: #{tpu_custom_call.1} parent=5 // pred_check_branch
        %197 = sbr.rel (%p194) target = $region12
      $region11: #{tpu_custom_call.1} parent=5 // pred_region
        %s198 = ssub.s32 %s22, 1
        // Predicated region
        $region13: #{tpu_custom_call.1} parent=11 // pred_check
          %p199 = pneg %p95
        $region14: #{tpu_custom_call.1} parent=11 // pred_check_branch
          %201 = sbr.rel (%p199) target = $region16
        $region15: #{tpu_custom_call.1} parent=11 // pred_region
          %203 = vsyncadd [#allocation6], 0
          %s204 = sshll.u32 %s2, 4
          %s205 = int_to_ptr.hbm [resolvable:$true] %s204
          %s206 = sshll.u32 [#allocation7], 4
          %s207 = int_to_ptr.vmem [resolvable:$true] %s206
          %212 = dma.hbm_to_vmem [thread:$0]  %s205, 256, %s207, [#allocation6], 128, 128, 8
        $region16: #{tpu_custom_call.1} parent=11 // pred_fallthru
          _
        // Predicated region
        $region17: #{tpu_custom_call.1} parent=11 // pred_check
          %p213 = pneg %p116
        $region18: #{tpu_custom_call.1} parent=11 // pred_check_branch
          %215 = sbr.rel (%p213) target = $region20
        $region19: #{tpu_custom_call.1} parent=11 // pred_region
          _
        $region20: #{tpu_custom_call.1} parent=11 // pred_fallthru
          _
        // Predicated region
        $region21: #{tpu_custom_call.1} parent=11 // pred_check
          %p216 = pneg %p137
        $region22: #{tpu_custom_call.1} parent=11 // pred_check_branch
          %218 = sbr.rel (%p216) target = $region24
        $region23: #{tpu_custom_call.1} parent=11 // pred_region
          %220 = vsyncadd [#allocation9], 0
          %s221 = sshll.u32 %s4, 4
          %s222 = int_to_ptr.hbm [resolvable:$true] %s221
          %s223 = sshll.u32 [#allocation8], 4
          %s224 = int_to_ptr.vmem [resolvable:$true] %s223
          %229 = dma.hbm_to_vmem [thread:$0]  %s222, 1024, %s224, [#allocation9], 128, 128, 8
        $region24: #{tpu_custom_call.1} parent=11 // pred_fallthru
          _
        // Predicated region
        $region25: #{tpu_custom_call.1} parent=11 // pred_check
          %p230 = pneg %p158
        $region26: #{tpu_custom_call.1} parent=11 // pred_check_branch
          %232 = sbr.rel (%p230) target = $region28
        $region27: #{tpu_custom_call.1} parent=11 // pred_region
          _
        $region28: #{tpu_custom_call.1} parent=11 // pred_fallthru
          _
      $region12: #{tpu_custom_call.1} parent=5 // pred_fallthru
        _
      %p233 = scmp.lt.s32.totalorder %s22, 2
      // Predicated region
      $region29: #{tpu_custom_call.1} parent=5 // pred_check
        %p234 = pneg %p233
      $region30: #{tpu_custom_call.1} parent=5 // pred_check_branch
        %236 = sbr.rel (%p234) target = $region32
      $region31: #{tpu_custom_call.1} parent=5 // pred_region
        // Predicated region
        $region33: #{tpu_custom_call.1} parent=31 // pred_check
          %p237 = pneg %p42
        $region34: #{tpu_custom_call.1} parent=31 // pred_check_branch
          %239 = sbr.rel (%p237) target = $region36
        $region35: #{tpu_custom_call.1} parent=31 // pred_region
          %s240 = sand.u32 %s32, 1
          %s241 = scalar_lea.sflag [#allocation3], %s240
          %s242 = sand.u32 %s32, 1
          %s243 = smul.addr %s242, 8
          %s244 = scalar_lea.vmem [#allocation2], %s243
          %246 = vsyncadd %s241, 0
          %s247 = smul.addr %s22, 8
          %s248 = scalar_lea.hbm %s0, %s247
          %s250 = sshll.u32 %s248, 4
          %s251 = int_to_ptr.hbm [resolvable:$true] %s250
          %s252 = sshll.u32 %s244, 4
          %s253 = int_to_ptr.vmem [resolvable:$true] %s252
          %255 = dma.hbm_to_vmem [thread:$0]  %s251, 128, %s253, %s241
        $region36: #{tpu_custom_call.1} parent=31 // pred_fallthru
          _
        // Predicated region
        $region37: #{tpu_custom_call.1} parent=31 // pred_check
          %p256 = pneg %p68
        $region38: #{tpu_custom_call.1} parent=31 // pred_check_branch
          %258 = sbr.rel (%p256) target = $region40
        $region39: #{tpu_custom_call.1} parent=31 // pred_region
          %s259 = sand.u32 %s22, 1
          %s260 = scalar_lea.sflag [#allocation6], %s259
          %s261 = sand.u32 %s58, 1
          %s262 = smul.addr %s261, 8
          %s263 = scalar_lea.vmem [#allocation5], %s262
          %265 = vsyncadd %s260, 0
          %s266 = smul.addr %s22, 8
          %s267 = scalar_lea.hbm %s1, %s266
          %s269 = sshll.u32 %s267, 4
          %s270 = int_to_ptr.hbm [resolvable:$true] %s269
          %s271 = sshll.u32 %s263, 4
          %s272 = int_to_ptr.vmem [resolvable:$true] %s271
          %274 = dma.hbm_to_vmem [thread:$0]  %s270, 128, %s272, %s260
        $region40: #{tpu_custom_call.1} parent=31 // pred_fallthru
          _
      $region32: #{tpu_custom_call.1} parent=5 // pred_fallthru
        _
      %p275 = scmp.le.s32.totalorder 1, %s22
      %p276 = scmp.lt.s32.totalorder %s22, 3
      %p277 = pnand %p275, %p276
      %p278 = pneg %p277
      // Predicated region
      $region41: #{tpu_custom_call.1} parent=5 // pred_check
        _
      $region42: #{tpu_custom_call.1} parent=5 // pred_check_branch
        %280 = sbr.rel (%p277) target = $region44
      $region43: #{tpu_custom_call.1} parent=5 // pred_region
        %s281 = ssub.s32 %s22, 1
        %s282 = sand.u32 %s35, 1
        %s283 = scalar_lea.sflag [#allocation3], %s282
        %s284 = sand.u32 %s35, 1
        %s285 = smul.addr %s284, 8
        %s286 = scalar_lea.vmem [#allocation2], %s285
        // Predicated region
        $region45: #{tpu_custom_call.1} parent=43 // pred_check
          %p287 = pneg %p48
        $region46: #{tpu_custom_call.1} parent=43 // pred_check_branch
          %289 = sbr.rel (%p287) target = $region48
        $region47: #{tpu_custom_call.1} parent=43 // pred_region
          %291 = dma.done %s283, 128
        $region48: #{tpu_custom_call.1} parent=43 // pred_fallthru
          _
        %s292 = sand.u32 %s27, 1
        %s293 = scalar_lea.sflag [#allocation6], %s292
        %s294 = sand.u32 %s61, 1
        %s295 = smul.addr %s294, 8
        %s296 = scalar_lea.vmem [#allocation5], %s295
        // Predicated region
        $region49: #{tpu_custom_call.1} parent=43 // pred_check
          %p297 = pneg %p74
        $region50: #{tpu_custom_call.1} parent=43 // pred_check_branch
          %299 = sbr.rel (%p297) target = $region52
        $region51: #{tpu_custom_call.1} parent=43 // pred_region
          %301 = dma.done %s293, 128
        $region52: #{tpu_custom_call.1} parent=43 // pred_fallthru
          _
        // Predicated region
        $region53: #{tpu_custom_call.1} parent=43 // pred_check
          %p302 = pneg %p95
        $region54: #{tpu_custom_call.1} parent=43 // pred_check_branch
          %304 = sbr.rel (%p302) target = $region56
        $region55: #{tpu_custom_call.1} parent=43 // pred_region
          %306 = dma.done [#allocation6], 256
        $region56: #{tpu_custom_call.1} parent=43 // pred_fallthru
          _
        // Predicated region
        $region57: #{tpu_custom_call.1} parent=43 // pred_check
          %p307 = pneg %p137
        $region58: #{tpu_custom_call.1} parent=43 // pred_check_branch
          %309 = sbr.rel (%p307) target = $region60
        $region59: #{tpu_custom_call.1} parent=43 // pred_region
          %311 = dma.done [#allocation9], 1024
        $region60: #{tpu_custom_call.1} parent=43 // pred_fallthru
          _
        %s312 = sand.u32 %s35, 1
        %s313 = scalar_lea.sflag [#allocation3], %s312
        %s314 = sand.u32 %s35, 1
        %s315 = smul.addr %s314, 8
        %s316 = scalar_lea.vmem [#allocation2], %s315
        %p317 = pneg %p48
        %p318 = pneg %p45
        %s319 = sand.u32 %s27, 1
        %s320 = scalar_lea.sflag [#allocation6], %s319
        %s321 = sand.u32 %s61, 1
        %s322 = smul.addr %s321, 8
        %s323 = scalar_lea.vmem [#allocation5], %s322
        %p324 = pneg %p74
        %p325 = pneg %p71
        %p326 = pneg %p95
        %p327 = pneg %p92
        %p328 = pneg %p116
        %p329 = pneg %p113
        %p330 = pneg %p137
        %p331 = pneg %p134
        %p332 = pneg %p158
        %p333 = pneg %p155
        %p334 = pneg %p184
        %p335 = pneg %p181
        %s336 = sand.u32 %s171, 1
        %s337 = scalar_lea.sflag [#allocation4], %s336
        %s338 = sand.u32 %s171, 1
        %s339 = smul.addr %s338, 8
        %s340 = scalar_lea.vmem [#allocation10], %s339
        %v341 = vld [vmem:[%s296] sm:$0xff]
        %v342 = vld [vmem:[#allocation7] sm:$0xff]
        %v343 = vld [vmem:[#allocation7 + $0x8] sm:$0xff]
        %v344 = vld [vmem:[%s3] sm:$0x1]
        %v346 = vperm.slane %v344, 0
        %vm348 = vcmask 130048
        %v350 = vsel %vm348, %v341, 0
        %352 = vmatpush.msra.mxu0 0.0
        %353 = vmatpush.msra.mxu0 0.0
        %354 = vmatpush.msra.mxu0 0.0
        %355 = vmatpush.msra.mxu0 0.0
        %356 = vmatpush.msra.mxu0 0.0
        %357 = vmatpush.msra.mxu0 0.0
        %358 = vmatpush.msra.mxu0 0.0
        %359 = vmatpush.msra.mxu0 0.0
        %360 = vmatpush.msra.mxu0 0.0
        %361 = vmatpush.msra.mxu0 0.0
        %362 = vmatpush.msra.mxu0 0.0
        %363 = vmatpush.msra.mxu0 0.0
        %364 = vmatpush.msra.mxu0 0.0
        %365 = vmatpush.msra.mxu0 0.0
        %366 = vmatpush.msra.mxu0 %v343
        %367 = vmatpush.msra.mxu0 %v342
        %368 = vmatmul.f32.gmra.mxu0 %v350
        %v369 = vpop.f32.mrf.mxu0
        %v370 = vadd.f32 %v346, %v369
        %371 = vdwg.mxu0
        %v372 = vmax.f32 %v370, 0.0
        %v373 = vld [vmem:[#allocation8] sm:$0xff]
        %v374 = vld [vmem:[#allocation8 + $0x8] sm:$0xff]
        %v375 = vld [vmem:[#allocation8 + $0x10] sm:$0xff]
        %v376 = vld [vmem:[#allocation8 + $0x18] sm:$0xff]
        %v377 = vld [vmem:[#allocation8 + $0x20] sm:$0xff]
        %v378 = vld [vmem:[#allocation8 + $0x28] sm:$0xff]
        %v379 = vld [vmem:[#allocation8 + $0x30] sm:$0xff]
        %v380 = vld [vmem:[#allocation8 + $0x38] sm:$0xff]
        %v381 = vld [vmem:[%s5] sm:$0x1]
        %v383 = vperm.slane %v381, 0
        %vm385 = vcmask 523264
        %v387 = vsel %vm385, %v372, 0
        %389 = vmatpush.msra.mxu0 0.0
        %390 = vmatpush.msra.mxu0 0.0
        %391 = vmatpush.msra.mxu0 0.0
        %392 = vmatpush.msra.mxu0 0.0
        %393 = vmatpush.msra.mxu0 0.0
        %394 = vmatpush.msra.mxu0 0.0
        %395 = vmatpush.msra.mxu0 0.0
        %396 = vmatpush.msra.mxu0 0.0
        %397 = vmatpush.msra.mxu0 %v380
        %398 = vmatpush.msra.mxu0 %v379
        %399 = vmatpush.msra.mxu0 %v378
        %400 = vmatpush.msra.mxu0 %v377
        %401 = vmatpush.msra.mxu0 %v376
        %402 = vmatpush.msra.mxu0 %v375
        %403 = vmatpush.msra.mxu0 %v374
        %404 = vmatpush.msra.mxu0 %v373
        %405 = vmatmul.f32.gmra.mxu0 %v387
        %v406 = vpop.f32.mrf.mxu0
        %v407 = vadd.f32 %v383, %v406
        %408 = vdwg.mxu0
        %v409 = vld [vmem:[%s286] sm:$0xff]
        %v410 = vmul.f32 %v407, 1.442695
        %v411 = vpow.pop %v410
        %v412 = vmul.f32 %v409, %v411
        %414 = vrot.lane.b32.xlu0 %v407, 96
        %v415 = vpop.permute.xlu0 %414
        %v417 = vadd.f32 %v412, %v415
        %vm418 = vcmask 261120
        %419 = vst.msk [vmem:[%s340] sm:$0xff] %vm418, %v417
        %s420 = sand.u32 %s171, 1
        %s421 = scalar_lea.sflag [#allocation4], %s420
        %s422 = sand.u32 %s171, 1
        %s423 = smul.addr %s422, 8
        %s424 = scalar_lea.vmem [#allocation10], %s423
        // Predicated region
        $region61: #{tpu_custom_call.1} parent=43 // pred_check
          %p425 = pneg %p181
        $region62: #{tpu_custom_call.1} parent=43 // pred_check_branch
          %427 = sbr.rel (%p425) target = $region64
        $region63: #{tpu_custom_call.1} parent=43 // pred_region
          %429 = vsyncadd %s421, 0
          %s430 = smul.addr %s27, 8
          %s431 = scalar_lea.hbm %s6, %s430
          %s433 = sshll.u32 %s424, 4
          %s434 = int_to_ptr.vmem [resolvable:$true] %s433
          %s435 = sshll.u32 %s431, 4
          %s436 = int_to_ptr.hbm [resolvable:$true] %s435
          %438 = dma.vmem_to_hbm [thread:$0]  %s434, 128, %s436, %s421
        $region64: #{tpu_custom_call.1} parent=43 // pred_fallthru
          _
      $region44: #{tpu_custom_call.1} parent=5 // pred_fallthru
        _
      %p439 = scmp.le.s32.totalorder 2, %s22
      // Predicated region
      $region65: #{tpu_custom_call.1} parent=5 // pred_check
        %p440 = pneg %p439
      $region66: #{tpu_custom_call.1} parent=5 // pred_check_branch
        %442 = sbr.rel (%p440) target = $region68
      $region67: #{tpu_custom_call.1} parent=5 // pred_region
        %s443 = ssub.s32 %s22, 2
        // Predicated region
        $region69: #{tpu_custom_call.1} parent=67 // pred_check
          %p444 = pneg %p187
        $region70: #{tpu_custom_call.1} parent=67 // pred_check_branch
          %446 = sbr.rel (%p444) target = $region72
        $region71: #{tpu_custom_call.1} parent=67 // pred_region
          %s447 = sand.u32 %s172, 1
          %s448 = scalar_lea.sflag [#allocation4], %s447
          %s449 = sand.u32 %s172, 1
          %s450 = smul.addr %s449, 8
          %s451 = scalar_lea.vmem [#allocation10], %s450
          %453 = dma.done %s448, 128
        $region72: #{tpu_custom_call.1} parent=67 // pred_fallthru
          _
      $region68: #{tpu_custom_call.1} parent=5 // pred_fallthru
        _
    $region6: #{tpu_custom_call.1} parent=1 // loop_footer
      %s26 = sadd.s32 1, %s22
    $region7: #{tpu_custom_call.1} parent=1 // loop_footer_branch
      %21 = sbr.rel target = $region3
    $region8: #{tpu_custom_call.1} parent=1 // loop_exit
      _
    %454 = vsyncpa [#allocation3], 1
    %s455 = scalar_lea.sflag [#allocation3], 1
    %456 = vsyncpa %s455, 1
    %457 = vsyncpa [#allocation6], 1
    %s458 = scalar_lea.sflag [#allocation6], 1
    %459 = vsyncpa %s458, 1
    %460 = vsyncpa [#allocation9], 1
    %461 = vsyncpa [#allocation4], 1
    %s462 = scalar_lea.sflag [#allocation4], 1
    %463 = vsyncpa %s462, 1

// kernel: tpu_custom_call.1
$region0: #{tpu_custom_call.1}
  #allocation0 [shape = 'u32[]', space=smem, size = 0x4, offset = 0x4, fixed_abs, tag = 'smem constant byte address 0x4 - core index']
  #allocation1 [shape = 'u32[72,128]{1,0:T(1,128)}', space=vmem, size = 0x9000, scoped, tag = 'internal scratch']
  %s0 = inlined_call_operand.hbm [shape: f32[16,32], index: 0, kind: input, shape index: {}]
  %s1 = inlined_call_operand.hbm [shape: f32[16,16], index: 1, kind: input, shape index: {}]
  %s2 = inlined_call_operand.hbm [shape: f32[16,64], index: 2, kind: input, shape index: {}]
  %s3 = inlined_call_operand.vmem [shape: f32[1,64], index: 3, kind: input, shape index: {}]
  %s4 = inlined_call_operand.hbm [shape: f32[64,64], index: 4, kind: input, shape index: {}]
  %s5 = inlined_call_operand.vmem [shape: f32[1,64], index: 5, kind: input, shape index: {}]
  %s6 = inlined_call_operand.hbm [shape: f32[16,32], index: 6, kind: output, shape index: {}]
  %s7 = sld [smem:[#allocation0]]
  $region73: #{tpu_custom_call.1} parent=0
    _
  %s9 = ssub.s32 1, %s7
  %s10 = scalar_select 0, %s9, %s7
  $region1: #{tpu_custom_call.1} parent=0
    #allocation2 [shape = 'u8[8192]{0}', space=vmem, size = 0x2000, scoped, tag = 'input window, operand 0']
    #allocation3 [shape = 's32[2]{0}', space=sflag, size = 0x8, scoped, tag = 'scoped memory for tpu_custom_call.1']
    #allocation4 [shape = 's32[2]{0}', space=sflag, size = 0x8, scoped, tag = 'scoped memory for tpu_custom_call.1']
    #allocation5 [shape = 'u8[8192]{0}', space=vmem, size = 0x2000, scoped, tag = 'input window, operand 1']
    #allocation6 [shape = 's32[2]{0}', space=sflag, size = 0x8, scoped, tag = 'scoped memory for tpu_custom_call.1']
    #allocation7 [shape = 'u8[8192]{0}', space=vmem, size = 0x2000, scoped, tag = 'input window, operand 2, single buffered']
    #allocation8 [shape = 'u8[32768]{0}', space=vmem, size = 0x8000, scoped, tag = 'input window, operand 4, single buffered']
    #allocation9 [shape = 's32[1]{0}', space=sflag, size = 0x4, scoped, tag = 'scoped memory for tpu_custom_call.1']
    #allocation10 [shape = 'u8[8192]{0}', space=vmem, size = 0x2000, scoped, tag = 'output window, operand 0']
    %11 = vsyncpa [#allocation3], 0
    %s12 = scalar_lea.sflag [#allocation3], 1
    %13 = vsyncpa %s12, 0
    %14 = vsyncpa [#allocation6], 0
    %s15 = scalar_lea.sflag [#allocation6], 1
    %16 = vsyncpa %s15, 0
    %17 = vsyncpa [#allocation9], 0
    %18 = vsyncpa [#allocation4], 0
    %s19 = scalar_lea.sflag [#allocation4], 1
    %20 = vsyncpa %s19, 0
    loop: start=0, step=1, limit=4
    $region2: #{tpu_custom_call.1} parent=1 // loop_pre_header
      _
    $region3: #{tpu_custom_call.1} parent=1 // loop_header
      %s22 = sphi 0, %s26
      %p23 = scmp.ge.s32.totalorder %s22, 4
      %s32 = sphi 0, %s34
      %s35 = sphi 0, %s32
      %s36 = sphi 0, %s35
      %s52 = sphi 0, %s36
      %s58 = sphi 0, %s60
      %s61 = sphi 0, %s58
      %s62 = sphi 0, %s61
      %s78 = sphi 0, %s62
      %s82 = sphi 0, %s82
      %s84 = sphi 0, %s82
      %s85 = sphi 0, %s84
      %s99 = sphi 0, %s85
      %s103 = sphi 0, %s103
      %s105 = sphi 0, %s103
      %s106 = sphi 0, %s105
      %s120 = sphi 0, %s106
      %s124 = sphi 0, %s124
      %s126 = sphi 0, %s124
      %s127 = sphi 0, %s126
      %s141 = sphi 0, %s127
      %s145 = sphi 0, %s145
      %s147 = sphi 0, %s145
      %s148 = sphi 0, %s147
      %s162 = sphi 0, %s148
      %s168 = sphi 0, %s170
      %s171 = sphi 0, %s168
      %s172 = sphi 0, %s171
      %s188 = sphi 0, %s172
    $region4: #{tpu_custom_call.1} parent=1 // loop_header_branch
      %25 = sbr.rel (%p23) target = $region8
    $region5: #{tpu_custom_call.1} parent=1 // loop_body
      %s27 = ssub.s32 %s22, 1
      %s28 = ssub.s32 %s22, 2
      %s29 = sadd.s32 %s22, 1
      %s30 = ssub.s32 %s22, %s29
      %p31 = scmp.eq.s32.totalorder %s30, 0
      %s33 = sadd.s32 %s32, 1
      %s34 = scalar_select %p31, %s32, %s33
      %p37 = pneg %p31
      %p38 = scmp.eq.s32.totalorder %s22, 1
      %p39 = por %p37, %p38
      %p40 = scmp.ne.s32.totalorder %s32, %s35
      %p41 = scmp.eq.s32.totalorder %s22, 0
      %p42 = por %p40, %p41
      %p43 = scmp.ne.s32.totalorder %s32, %s35
      %p44 = scmp.eq.s32.totalorder %s27, 1
      %p45 = por %p43, %p44
      %p46 = scmp.ne.s32.totalorder %s35, %s36
      %p47 = scmp.eq.s32.totalorder %s27, 0
      %p48 = por %p46, %p47
      %p49 = scmp.ne.s32.totalorder %s35, %s36
      %p50 = scmp.eq.s32.totalorder %s28, 1
      %p51 = por %p49, %p50
      %p53 = scmp.ne.s32.totalorder %s36, %s52
      %p54 = scmp.eq.s32.totalorder %s28, 0
      %p55 = por %p53, %p54
      %s56 = ssub.s32 %s22, %s29
      %p57 = scmp.eq.s32.totalorder %s56, 0
      %s59 = sadd.s32 %s58, 1
      %s60 = scalar_select %p57, %s58, %s59
      %p63 = pneg %p57
      %p64 = scmp.eq.s32.totalorder %s22, 1
      %p65 = por %p63, %p64
      %p66 = scmp.ne.s32.totalorder %s58, %s61
      %p67 = scmp.eq.s32.totalorder %s22, 0
      %p68 = por %p66, %p67
      %p69 = scmp.ne.s32.totalorder %s58, %s61
      %p70 = scmp.eq.s32.totalorder %s27, 1
      %p71 = por %p69, %p70
      %p72 = scmp.ne.s32.totalorder %s61, %s62
      %p73 = scmp.eq.s32.totalorder %s27, 0
      %p74 = por %p72, %p73
      %p75 = scmp.ne.s32.totalorder %s61, %s62
      %p76 = scmp.eq.s32.totalorder %s28, 1
      %p77 = por %p75, %p76
      %p79 = scmp.ne.s32.totalorder %s62, %s78
      %p80 = scmp.eq.s32.totalorder %s28, 0
      %p81 = por %p79, %p80
      %s83 = sadd.s32 %s82, 1
      %p86 = scmp.eq.s32.totalorder %s22, 1
      %p87 = scmp.ne.s32.totalorder %s82, %s84
      %p88 = scmp.eq.s32.totalorder %s22, 0
      %p89 = por %p87, %p88
      %p90 = scmp.ne.s32.totalorder %s82, %s84
      %p91 = scmp.eq.s32.totalorder %s27, 1
      %p92 = por %p90, %p91
      %p93 = scmp.ne.s32.totalorder %s84, %s85
      %p94 = scmp.eq.s32.totalorder %s27, 0
      %p95 = por %p93, %p94
      %p96 = scmp.ne.s32.totalorder %s84, %s85
      %p97 = scmp.eq.s32.totalorder %s28, 1
      %p98 = por %p96, %p97
      %p100 = scmp.ne.s32.totalorder %s85, %s99
      %p101 = scmp.eq.s32.totalorder %s28, 0
      %p102 = por %p100, %p101
      %s104 = sadd.s32 %s103, 1
      %p107 = scmp.eq.s32.totalorder %s22, 1
      %p108 = scmp.ne.s32.totalorder %s103, %s105
      %p109 = scmp.eq.s32.totalorder %s22, 0
      %p110 = por %p108, %p109
      %p111 = scmp.ne.s32.totalorder %s103, %s105
      %p112 = scmp.eq.s32.totalorder %s27, 1
      %p113 = por %p111, %p112
      %p114 = scmp.ne.s32.totalorder %s105, %s106
      %p115 = scmp.eq.s32.totalorder %s27, 0
      %p116 = por %p114, %p115
      %p117 = scmp.ne.s32.totalorder %s105, %s106
      %p118 = scmp.eq.s32.totalorder %s28, 1
      %p119 = por %p117, %p118
      %p121 = scmp.ne.s32.totalorder %s106, %s120
      %p122 = scmp.eq.s32.totalorder %s28, 0
      %p123 = por %p121, %p122
      %s125 = sadd.s32 %s124, 1
      %p128 = scmp.eq.s32.totalorder %s22, 1
      %p129 = scmp.ne.s32.totalorder %s124, %s126
      %p130 = scmp.eq.s32.totalorder %s22, 0
      %p131 = por %p129, %p130
      %p132 = scmp.ne.s32.totalorder %s124, %s126
      %p133 = scmp.eq.s32.totalorder %s27, 1
      %p134 = por %p132, %p133
      %p135 = scmp.ne.s32.totalorder %s126, %s127
      %p136 = scmp.eq.s32.totalorder %s27, 0
      %p137 = por %p135, %p136
      %p138 = scmp.ne.s32.totalorder %s126, %s127
      %p139 = scmp.eq.s32.totalorder %s28, 1
      %p140 = por %p138, %p139
      %p142 = scmp.ne.s32.totalorder %s127, %s141
      %p143 = scmp.eq.s32.totalorder %s28, 0
      %p144 = por %p142, %p143
      %s146 = sadd.s32 %s145, 1
      %p149 = scmp.eq.s32.totalorder %s22, 1
      %p150 = scmp.ne.s32.totalorder %s145, %s147
      %p151 = scmp.eq.s32.totalorder %s22, 0
      %p152 = por %p150, %p151
      %p153 = scmp.ne.s32.totalorder %s145, %s147
      %p154 = scmp.eq.s32.totalorder %s27, 1
      %p155 = por %p153, %p154
      %p156 = scmp.ne.s32.totalorder %s147, %s148
      %p157 = scmp.eq.s32.totalorder %s27, 0
      %p158 = por %p156, %p157
      %p159 = scmp.ne.s32.totalorder %s147, %s148
      %p160 = scmp.eq.s32.totalorder %s28, 1
      %p161 = por %p159, %p160
      %p163 = scmp.ne.s32.totalorder %s148, %s162
      %p164 = scmp.eq.s32.totalorder %s28, 0
      %p165 = por %p163, %p164
      %s166 = ssub.s32 %s22, %s29
      %p167 = scmp.eq.s32.totalorder %s166, 0
      %s169 = sadd.s32 %s168, 1
      %s170 = scalar_select %p167, %s168, %s169
      %p173 = pneg %p167
      %p174 = scmp.eq.s32.totalorder %s22, 1
      %p175 = por %p173, %p174
      %p176 = scmp.ne.s32.totalorder %s168, %s171
      %p177 = scmp.eq.s32.totalorder %s22, 0
      %p178 = por %p176, %p177
      %p179 = scmp.ne.s32.totalorder %s168, %s171
      %p180 = scmp.eq.s32.totalorder %s27, 1
      %p181 = por %p179, %p180
      %p182 = scmp.ne.s32.totalorder %s171, %s172
      %p183 = scmp.eq.s32.totalorder %s27, 0
      %p184 = por %p182, %p183
      %p185 = scmp.ne.s32.totalorder %s171, %s172
      %p186 = scmp.eq.s32.totalorder %s28, 1
      %p187 = por %p185, %p186
      %p189 = scmp.ne.s32.totalorder %s172, %s188
      %p190 = scmp.eq.s32.totalorder %s28, 0
      %p191 = por %p189, %p190
      %p192 = scmp.le.s32.totalorder 1, %s22
      %p193 = scmp.lt.s32.totalorder %s22, 3
      %p194 = pnand %p192, %p193
      %p195 = pneg %p194
      // Predicated region
      $region9: #{tpu_custom_call.1} parent=5 // pred_check
        _
      $region10: #{tpu_custom_call.1} parent=5 // pred_check_branch
        %197 = sbr.rel (%p194) target = $region12
      $region11: #{tpu_custom_call.1} parent=5 // pred_region
        %s198 = ssub.s32 %s22, 1
        // Predicated region
        $region13: #{tpu_custom_call.1} parent=11 // pred_check
          %p199 = pneg %p95
        $region14: #{tpu_custom_call.1} parent=11 // pred_check_branch
          %201 = sbr.rel (%p199) target = $region16
        $region15: #{tpu_custom_call.1} parent=11 // pred_region
          %203 = vsyncadd [#allocation6], 0
          %s204 = sshll.u32 %s2, 4
          %s205 = int_to_ptr.hbm [resolvable:$true] %s204
          %s206 = sshll.u32 [#allocation7], 4
          %s207 = int_to_ptr.vmem [resolvable:$true] %s206
          %212 = dma.hbm_to_vmem [thread:$0]  %s205, 256, %s207, [#allocation6], 128, 128, 8
        $region16: #{tpu_custom_call.1} parent=11 // pred_fallthru
          _
        // Predicated region
        $region17: #{tpu_custom_call.1} parent=11 // pred_check
          %p213 = pneg %p116
        $region18: #{tpu_custom_call.1} parent=11 // pred_check_branch
          %215 = sbr.rel (%p213) target = $region20
        $region19: #{tpu_custom_call.1} parent=11 // pred_region
          _
        $region20: #{tpu_custom_call.1} parent=11 // pred_fallthru
          _
        // Predicated region
        $region21: #{tpu_custom_call.1} parent=11 // pred_check
          %p216 = pneg %p137
        $region22: #{tpu_custom_call.1} parent=11 // pred_check_branch
          %218 = sbr.rel (%p216) target = $region24
        $region23: #{tpu_custom_call.1} parent=11 // pred_region
          %220 = vsyncadd [#allocation9], 0
          %s221 = sshll.u32 %s4, 4
          %s222 = int_to_ptr.hbm [resolvable:$true] %s221
          %s223 = sshll.u32 [#allocation8], 4
          %s224 = int_to_ptr.vmem [resolvable:$true] %s223
          %229 = dma.hbm_to_vmem [thread:$0]  %s222, 1024, %s224, [#allocation9], 128, 128, 8
        $region24: #{tpu_custom_call.1} parent=11 // pred_fallthru
          _
        // Predicated region
        $region25: #{tpu_custom_call.1} parent=11 // pred_check
          %p230 = pneg %p158
        $region26: #{tpu_custom_call.1} parent=11 // pred_check_branch
          %232 = sbr.rel (%p230) target = $region28
        $region27: #{tpu_custom_call.1} parent=11 // pred_region
          _
        $region28: #{tpu_custom_call.1} parent=11 // pred_fallthru
          _
      $region12: #{tpu_custom_call.1} parent=5 // pred_fallthru
        _
      %p233 = scmp.lt.s32.totalorder %s22, 2
      // Predicated region
      $region29: #{tpu_custom_call.1} parent=5 // pred_check
        %p234 = pneg %p233
      $region30: #{tpu_custom_call.1} parent=5 // pred_check_branch
        %236 = sbr.rel (%p234) target = $region32
      $region31: #{tpu_custom_call.1} parent=5 // pred_region
        // Predicated region
        $region33: #{tpu_custom_call.1} parent=31 // pred_check
          %p237 = pneg %p42
        $region34: #{tpu_custom_call.1} parent=31 // pred_check_branch
          %239 = sbr.rel (%p237) target = $region36
        $region35: #{tpu_custom_call.1} parent=31 // pred_region
          %s240 = sand.u32 %s32, 1
          %s241 = scalar_lea.sflag [#allocation3], %s240
          %s242 = sand.u32 %s32, 1
          %s243 = smul.addr %s242, 8
          %s244 = scalar_lea.vmem [#allocation2], %s243
          %246 = vsyncadd %s241, 0
          %s247 = smul.addr %s22, 8
          %s248 = scalar_lea.hbm %s0, %s247
          %s250 = sshll.u32 %s248, 4
          %s251 = int_to_ptr.hbm [resolvable:$true] %s250
          %s252 = sshll.u32 %s244, 4
          %s253 = int_to_ptr.vmem [resolvable:$true] %s252
          %255 = dma.hbm_to_vmem [thread:$0]  %s251, 128, %s253, %s241
        $region36: #{tpu_custom_call.1} parent=31 // pred_fallthru
          _
        // Predicated region
        $region37: #{tpu_custom_call.1} parent=31 // pred_check
          %p256 = pneg %p68
        $region38: #{tpu_custom_call.1} parent=31 // pred_check_branch
          %258 = sbr.rel (%p256) target = $region40
        $region39: #{tpu_custom_call.1} parent=31 // pred_region
          %s259 = sand.u32 %s22, 1
          %s260 = scalar_lea.sflag [#allocation6], %s259
          %s261 = sand.u32 %s58, 1
          %s262 = smul.addr %s261, 8
          %s263 = scalar_lea.vmem [#allocation5], %s262
          %265 = vsyncadd %s260, 0
          %s266 = smul.addr %s22, 8
          %s267 = scalar_lea.hbm %s1, %s266
          %s269 = sshll.u32 %s267, 4
          %s270 = int_to_ptr.hbm [resolvable:$true] %s269
          %s271 = sshll.u32 %s263, 4
          %s272 = int_to_ptr.vmem [resolvable:$true] %s271
          %274 = dma.hbm_to_vmem [thread:$0]  %s270, 128, %s272, %s260
        $region40: #{tpu_custom_call.1} parent=31 // pred_fallthru
          _
      $region32: #{tpu_custom_call.1} parent=5 // pred_fallthru
        _
      %p275 = scmp.le.s32.totalorder 1, %s22
      %p276 = scmp.lt.s32.totalorder %s22, 3
      %p277 = pnand %p275, %p276
      %p278 = pneg %p277
      // Predicated region
      $region41: #{tpu_custom_call.1} parent=5 // pred_check
        _
      $region42: #{tpu_custom_call.1} parent=5 // pred_check_branch
        %280 = sbr.rel (%p277) target = $region44
      $region43: #{tpu_custom_call.1} parent=5 // pred_region
        %s281 = ssub.s32 %s22, 1
        %s282 = sand.u32 %s35, 1
        %s283 = scalar_lea.sflag [#allocation3], %s282
        %s284 = sand.u32 %s35, 1
        %s285 = smul.addr %s284, 8
        %s286 = scalar_lea.vmem [#allocation2], %s285
        // Predicated region
        $region45: #{tpu_custom_call.1} parent=43 // pred_check
          %p287 = pneg %p48
        $region46: #{tpu_custom_call.1} parent=43 // pred_check_branch
          %289 = sbr.rel (%p287) target = $region48
        $region47: #{tpu_custom_call.1} parent=43 // pred_region
          %291 = dma.done %s283, 128
        $region48: #{tpu_custom_call.1} parent=43 // pred_fallthru
          _
        %s292 = sand.u32 %s27, 1
        %s293 = scalar_lea.sflag [#allocation6], %s292
        %s294 = sand.u32 %s61, 1
        %s295 = smul.addr %s294, 8
        %s296 = scalar_lea.vmem [#allocation5], %s295
        // Predicated region
        $region49: #{tpu_custom_call.1} parent=43 // pred_check
          %p297 = pneg %p74
        $region50: #{tpu_custom_call.1} parent=43 // pred_check_branch
          %299 = sbr.rel (%p297) target = $region52
        $region51: #{tpu_custom_call.1} parent=43 // pred_region
          %301 = dma.done %s293, 128
        $region52: #{tpu_custom_call.1} parent=43 // pred_fallthru
          _
        // Predicated region
        $region53: #{tpu_custom_call.1} parent=43 // pred_check
          %p302 = pneg %p95
        $region54: #{tpu_custom_call.1} parent=43 // pred_check_branch
          %304 = sbr.rel (%p302) target = $region56
        $region55: #{tpu_custom_call.1} parent=43 // pred_region
          %306 = dma.done [#allocation6], 256
        $region56: #{tpu_custom_call.1} parent=43 // pred_fallthru
          _
        // Predicated region
        $region57: #{tpu_custom_call.1} parent=43 // pred_check
          %p307 = pneg %p137
        $region58: #{tpu_custom_call.1} parent=43 // pred_check_branch
          %309 = sbr.rel (%p307) target = $region60
        $region59: #{tpu_custom_call.1} parent=43 // pred_region
          %311 = dma.done [#allocation9], 1024
        $region60: #{tpu_custom_call.1} parent=43 // pred_fallthru
          _
        %s312 = sand.u32 %s35, 1
        %s313 = scalar_lea.sflag [#allocation3], %s312
        %s314 = sand.u32 %s35, 1
        %s315 = smul.addr %s314, 8
        %s316 = scalar_lea.vmem [#allocation2], %s315
        %p317 = pneg %p48
        %p318 = pneg %p45
        %s319 = sand.u32 %s27, 1
        %s320 = scalar_lea.sflag [#allocation6], %s319
        %s321 = sand.u32 %s61, 1
        %s322 = smul.addr %s321, 8
        %s323 = scalar_lea.vmem [#allocation5], %s322
        %p324 = pneg %p74
        %p325 = pneg %p71
        %p326 = pneg %p95
        %p327 = pneg %p92
        %p328 = pneg %p116
        %p329 = pneg %p113
        %p330 = pneg %p137
        %p331 = pneg %p134
        %p332 = pneg %p158
        %p333 = pneg %p155
        %p334 = pneg %p184
        %p335 = pneg %p181
        %s336 = sand.u32 %s171, 1
        %s337 = scalar_lea.sflag [#allocation4], %s336
        %s338 = sand.u32 %s171, 1
        %s339 = smul.addr %s338, 8
        %s340 = scalar_lea.vmem [#allocation10], %s339
        %v341 = vld [vmem:[%s296] sm:$0xff]
        %v342 = vld [vmem:[#allocation7] sm:$0xff]
        %v343 = vld [vmem:[#allocation7 + $0x8] sm:$0xff]
        %v344 = vld [vmem:[%s3] sm:$0x1]
        %v346 = vperm.slane %v344, 0
        %vm348 = vcmask 130048
        %v350 = vsel %vm348, %v341, 0
        %352 = vmatpush.msra.mxu0 0.0
        %353 = vmatpush.msra.mxu0 0.0
        %354 = vmatpush.msra.mxu0 0.0
        %355 = vmatpush.msra.mxu0 0.0
        %356 = vmatpush.msra.mxu0 0.0
        %357 = vmatpush.msra.mxu0 0.0
        %358 = vmatpush.msra.mxu0 0.0
        %359 = vmatpush.msra.mxu0 0.0
        %360 = vmatpush.msra.mxu0 0.0
        %361 = vmatpush.msra.mxu0 0.0
        %362 = vmatpush.msra.mxu0 0.0
        %363 = vmatpush.msra.mxu0 0.0
        %364 = vmatpush.msra.mxu0 0.0
        %365 = vmatpush.msra.mxu0 0.0
        %366 = vmatpush.msra.mxu0 %v343
        %367 = vmatpush.msra.mxu0 %v342
        %368 = vmatmul.f32.gmra.mxu0 %v350
        %v369 = vpop.f32.mrf.mxu0
        %v370 = vadd.f32 %v346, %v369
        %371 = vdwg.mxu0
        %v372 = vmax.f32 %v370, 0.0
        %v373 = vld [vmem:[#allocation8] sm:$0xff]
        %v374 = vld [vmem:[#allocation8 + $0x8] sm:$0xff]
        %v375 = vld [vmem:[#allocation8 + $0x10] sm:$0xff]
        %v376 = vld [vmem:[#allocation8 + $0x18] sm:$0xff]
        %v377 = vld [vmem:[#allocation8 + $0x20] sm:$0xff]
        %v378 = vld [vmem:[#allocation8 + $0x28] sm:$0xff]
        %v379 = vld [vmem:[#allocation8 + $0x30] sm:$0xff]
        %v380 = vld [vmem:[#allocation8 + $0x38] sm:$0xff]
        %v381 = vld [vmem:[%s5] sm:$0x1]
        %v383 = vperm.slane %v381, 0
        %vm385 = vcmask 523264
        %v387 = vsel %vm385, %v372, 0
        %389 = vmatpush.msra.mxu0 0.0
        %390 = vmatpush.msra.mxu0 0.0
        %391 = vmatpush.msra.mxu0 0.0
        %392 = vmatpush.msra.mxu0 0.0
        %393 = vmatpush.msra.mxu0 0.0
        %394 = vmatpush.msra.mxu0 0.0
        %395 = vmatpush.msra.mxu0 0.0
        %396 = vmatpush.msra.mxu0 0.0
        %397 = vmatpush.msra.mxu0 %v380
        %398 = vmatpush.msra.mxu0 %v379
        %399 = vmatpush.msra.mxu0 %v378
        %400 = vmatpush.msra.mxu0 %v377
        %401 = vmatpush.msra.mxu0 %v376
        %402 = vmatpush.msra.mxu0 %v375
        %403 = vmatpush.msra.mxu0 %v374
        %404 = vmatpush.msra.mxu0 %v373
        %405 = vmatmul.f32.gmra.mxu0 %v387
        %v406 = vpop.f32.mrf.mxu0
        %v407 = vadd.f32 %v383, %v406
        %408 = vdwg.mxu0
        %v409 = vld [vmem:[%s286] sm:$0xff]
        %v410 = vmul.f32 %v407, 1.442695
        %v411 = vpow.pop %v410
        %v412 = vmul.f32 %v409, %v411
        %414 = vrot.lane.b32.xlu0 %v407, 96
        %v415 = vpop.permute.xlu0 %414
        %v417 = vadd.f32 %v412, %v415
        %vm418 = vcmask 261120
        %419 = vst.msk [vmem:[%s340] sm:$0xff] %vm418, %v417
        %s420 = sand.u32 %s171, 1
        %s421 = scalar_lea.sflag [#allocation4], %s420
        %s422 = sand.u32 %s171, 1
        %s423 = smul.addr %s422, 8
        %s424 = scalar_lea.vmem [#allocation10], %s423
        // Predicated region
        $region61: #{tpu_custom_call.1} parent=43 // pred_check
          %p425 = pneg %p181
        $region62: #{tpu_custom_call.1} parent=43 // pred_check_branch
          %427 = sbr.rel (%p425) target = $region64
        $region63: #{tpu_custom_call.1} parent=43 // pred_region
          %429 = vsyncadd %s421, 0
          %s430 = smul.addr %s27, 8
          %s431 = scalar_lea.hbm %s6, %s430
          %s433 = sshll.u32 %s424, 4
          %s434 = int_to_ptr.vmem [resolvable:$true] %s433
          %s435 = sshll.u32 %s431, 4
          %s436 = int_to_ptr.hbm [resolvable:$true] %s435
          %438 = dma.vmem_to_hbm [thread:$0]  %s434, 128, %s436, %s421
        $region64: #{tpu_custom_call.1} parent=43 // pred_fallthru
          _
      $region44: #{tpu_custom_call.1} parent=5 // pred_fallthru
        _
      %p439 = scmp.le.s32.totalorder 2, %s22
      // Predicated region
      $region65: #{tpu_custom_call.1} parent=5 // pred_check
        %p440 = pneg %p439
      $region66: #{tpu_custom_call.1} parent=5 // pred_check_branch
        %442 = sbr.rel (%p440) target = $region68
      $region67: #{tpu_custom_call.1} parent=5 // pred_region
        %s443 = ssub.s32 %s22, 2
        // Predicated region
        $region69: #{tpu_custom_call.1} parent=67 // pred_check
          %p444 = pneg %p187
        $region70: #{tpu_custom_call.1} parent=67 // pred_check_branch
          %446 = sbr.rel (%p444) target = $region72
        $region71: #{tpu_custom_call.1} parent=67 // pred_region
          %s447 = sand.u32 %s172, 1
          %s448 = scalar_lea.sflag [#allocation4], %s447
          %s449 = sand.u32 %s172, 1
          %s450 = smul.addr %s449, 8
          %s451 = scalar_lea.vmem [#allocation10], %s450
          %453 = dma.done %s448, 128
        $region72: #{tpu_custom_call.1} parent=67 // pred_fallthru
          _
      $region68: #{tpu_custom_call.1} parent=5 // pred_fallthru
        _
    $region6: #{tpu_custom_call.1} parent=1 // loop_footer
      %s26 = sadd.s32 1, %s22
    $region7: #{tpu_custom_call.1} parent=1 // loop_footer_branch
      %21 = sbr.rel target = $region3
    $region8: #{tpu_custom_call.1} parent=1 // loop_exit
      _
    %454 = vsyncpa [#allocation3], 1
    %s455 = scalar_lea.sflag [#allocation3], 1
    %456 = vsyncpa %s455, 1
    %457 = vsyncpa [#allocation6], 1
    %s458 = scalar_lea.sflag [#allocation6], 1
    %459 = vsyncpa %s458, 1
    %460 = vsyncpa [#allocation9], 1
    %461 = vsyncpa [#allocation4], 1
    %s462 = scalar_lea.sflag [#allocation4], 1
    %463 = vsyncpa %s462, 1

</llo_original>
